<compile_context>
chip_gen: v7x
topology: tpu7x:2x2x1
jax: 0.10.0
libtpu: 0.0.40
codegen_flags: <defaults>
</compile_context>

<pallas_src>
import jax
import jax.numpy as jnp
from jax.experimental import pallas as pl
from jax.experimental.pallas import tpu as pltpu


def _cdiv(a, b):
    return (a + b - 1) // b


def mgcn_sub_forward(x, w_theta, b_theta, w_phi, b_phi,
                     w1, b1, w2, b2, w_psi, b_psi, *, batch_tile=None):
    """x: (B, C_in, H, W). 1x1 conv weights given as 2-D (out, in) matrices."""
    B, C_in, H, W = x.shape
    HW = H * W
    N = w_theta.shape[0]
    mid = w_phi.shape[0]
    f32 = jnp.float32

    # ---- wrapper-side algebraic folds (grid-invariant, done once) -----------
    wcat = jnp.concatenate([w_theta, w_phi], axis=0).astype(x.dtype)   # (N+mid, C_in)
    bstack = jnp.concatenate(
        [b_theta, b_phi, b_psi]).astype(f32).reshape(N + mid + C_in, 1)  # (N+mid+C_in, 1)
    w1pT = (jnp.eye(N, dtype=f32) - w1.astype(f32)).T                   # (N, N)
    s2 = w2.astype(f32).sum(axis=1)                                     # (mid,)
    gbiasT = b2.astype(f32)[:, None] - jnp.outer(s2, b1.astype(f32))    # (mid, N)
    wpre = jnp.dot(w_psi.astype(f32), w2.astype(f32))                   # (C_in, mid)
    gb2 = jnp.dot(w_psi.astype(f32), gbiasT)                            # (C_in, N)

    # ---- lane-dense HW (pad to multiple of 128 if needed) -------------------
    HW_pad = _cdiv(HW, 128) * 128
    x_flat = x.reshape(B, C_in, HW)
    if HW_pad != HW:
        x_flat = jnp.pad(x_flat, ((0, 0), (0, 0), (0, HW_pad - HW)))

    # ---- batch tiling: amortize per-step overhead, keep >=2 steps for v7x ---
    if batch_tile is None:
        target_steps = 2 if B >= 2 else 1
        Bt = _cdiv(B, target_steps)
        itemsize = jnp.dtype(x.dtype).itemsize
        per_elem = 2 * 2 * C_in * HW_pad * itemsize      # x + out, double-buffered
        Bt = max(1, min(Bt, (8 * 1024 * 1024) // max(per_elem, 1), 8))
    else:
        Bt = int(batch_tile)
    num_steps = _cdiv(B, Bt)
    Bpad = num_steps * Bt
    if Bpad != B:
        x_flat = jnp.pad(x_flat, ((0, Bpad - B), (0, 0), (0, 0)))

    def kernel(x_ref, wcat_ref, bstack_ref, w1pt_ref, wpre_ref, gb2_ref, o_ref):
        wcat_v = wcat_ref[...]                          # (N+mid, C_in)
        b_all = bstack_ref[...].astype(jnp.float32)     # (N+mid+C_in, 1)
        bcat = b_all[:N + mid]                          # (N+mid, 1)
        bpsi_v = b_all[N + mid:]                        # (C_in, 1)
        w1pt = w1pt_ref[...]                            # (N, N)
        wpre_v = wpre_ref[...]                          # (C_in, mid)
        gb2_v = gb2_ref[...]                            # (C_in, N)

        # Short static unroll over the Bt batch elements in this block.
        for i in range(Bt):
            xb = x_ref[i]                               # (C_in, HW_pad)
            # Fused theta+phi 1x1 convs: one MXU launch.
            bmxr = jnp.dot(wcat_v, xb,
                           preferred_element_type=jnp.float32) + bcat   # (N+mid, HW_pad)
            bm = bmxr[:N]                               # (N,   HW_pad)
            xr = bmxr[N:]                               # (mid, HW_pad)
            if HW_pad != HW:
                # Zero padded columns of bm so both the HW contraction and the
                # final product ignore the padding (padded output cols sliced away).
                lane = jax.lax.broadcasted_iota(jnp.int32, (N, HW_pad), 1)
                bm = jnp.where(lane < HW, bm, 0.0)
            # vt = V^T  (contract over HW; A·B^T MXU mode, lane contraction).
            vt = jnp.einsum("mh,nh->mn", xr, bm,
                            preferred_element_type=jnp.float32)         # (mid, N)
            # Folded GCN + phi_inv weight chain (tiny matmuls).
            t1 = jnp.dot(vt, w1pt, preferred_element_type=jnp.float32)  # (mid, N)
            g = jnp.dot(wpre_v, t1,
                        preferred_element_type=jnp.float32) + gb2_v     # (C_in, N)
            # Project back over HW and add phi_inv bias.
            out = jnp.dot(g, bm,
                          preferred_element_type=jnp.float32) + bpsi_v  # (C_in, HW_pad)
            o_ref[i] = out.astype(o_ref.dtype)

    out_flat = pl.pallas_call(
        kernel,
        out_shape=jax.ShapeDtypeStruct((Bpad, C_in, HW_pad), x.dtype),
        grid_spec=pltpu.PrefetchScalarGridSpec(
            num_scalar_prefetch=0,
            grid=(num_steps,),
            in_specs=[
                pl.BlockSpec((Bt, C_in, HW_pad), lambda g: (g, 0, 0)),   # x slab
                pl.BlockSpec((N + mid, C_in), lambda g: (0, 0)),         # [Wth; Wph]
                pl.BlockSpec((N + mid + C_in, 1), lambda g: (0, 0)),     # [bth; bph; bpsi]
                pl.BlockSpec((N, N), lambda g: (0, 0)),                  # (I - W1)^T
                pl.BlockSpec((C_in, mid), lambda g: (0, 0)),             # Wpsi @ W2
                pl.BlockSpec((C_in, N), lambda g: (0, 0)),               # Wpsi @ GBIAS^T
            ],
            out_specs=pl.BlockSpec((Bt, C_in, HW_pad), lambda g: (g, 0, 0)),
        ),
        compiler_params=pltpu.CompilerParams(
            dimension_semantics=("parallel",),   # batch steps shard across v7x TCs
        ),
    )(x_flat, wcat, bstack, w1pT, wpre, gb2)

    return out_flat[:B, :, :HW].reshape(B, C_in, H, W)


def mgcn_sub_reference(x, w_theta, b_theta, w_phi, b_phi,
                       w1, b1, w2, b2, w_psi, b_psi):
    """Pure-JAX mirror of the PyTorch MGCN_sub.forward (unfolded form)."""
    B, C_in, H, W = x.shape
    HW = H * W
    X = x.reshape(B, C_in, HW)
    bm = jnp.einsum("nc,bch->bnh", w_theta, X) + b_theta[None, :, None]
    xr = jnp.einsum("mc,bch->bmh", w_phi, X) + b_phi[None, :, None]
    v = jnp.einsum("bnh,bmh->bnm", bm, xr)                      # B.bmm(Xr^T)
    # GCN (conv1d_1 over N, residual, conv1d_2 over mid) -- no nonlinearity.
    h1 = jnp.einsum("pn,bnm->bpm", w1, v) + b1[None, :, None]
    t = v - h1
    z = jnp.einsum("qm,bnm->bnq", w2, t) + b2[None, None, :]
    # project back
    y = jnp.einsum("bnq,bnh->bqh", z, bm)                       # (B, mid, HW)
    out = jnp.einsum("cq,bqh->bch", w_psi, y) + b_psi[None, :, None]
    return out.reshape(B, C_in, H, W)


if __name__ == "__main__":
    # Shapes consistent with MGCN_sub(in_channels=8, mid_channels=16, N=8)
    # on a 16x16 feature map (HW = 256 -> lane-dense last dim, no padding path).
    B, C_in, H, W = 2, 8, 16, 16
    mid, N = 16, 8

    key = jax.random.PRNGKey(0)
    keys = jax.random.split(key, 11)
    x = jax.random.normal(keys[0], (B, C_in, H, W), dtype=jnp.float32)

    # Synthetic parameters (1x1 conv weights flattened to (out, in) matrices).
    w_theta = 0.1 * jax.random.normal(keys[1], (N, C_in), dtype=jnp.float32)
    b_theta = 0.1 * jax.random.normal(keys[2], (N,), dtype=jnp.float32)
    w_phi = 0.1 * jax.random.normal(keys[3], (mid, C_in), dtype=jnp.float32)
    b_phi = 0.1 * jax.random.normal(keys[4], (mid,), dtype=jnp.float32)
    w1 = 0.1 * jax.random.normal(keys[5], (N, N), dtype=jnp.float32)
    b1 = 0.1 * jax.random.normal(keys[6], (N,), dtype=jnp.float32)
    w2 = 0.1 * jax.random.normal(keys[7], (mid, mid), dtype=jnp.float32)
    b2 = 0.1 * jax.random.normal(keys[8], (mid,), dtype=jnp.float32)
    w_psi = 0.1 * jax.random.normal(keys[9], (C_in, mid), dtype=jnp.float32)
    b_psi = 0.1 * jax.random.normal(keys[10], (C_in,), dtype=jnp.float32)

    out = mgcn_sub_forward(x, w_theta, b_theta, w_phi, b_phi,
                           w1, b1, w2, b2, w_psi, b_psi)
    jax.block_until_ready(out)

    ref = mgcn_sub_reference(x, w_theta, b_theta, w_phi, b_phi,
                             w1, b1, w2, b2, w_psi, b_psi)
    assert out.shape == (B, C_in, H, W)
    assert jnp.allclose(out, ref, atol=2e-4, rtol=2e-4), \
        float(jnp.max(jnp.abs(out - ref)))

    print("KERNEL_OK")
</pallas_src>

<mosaic_0001>
module attributes {stable_mosaic.version = 11 : i64} {
  func.func @kernel(%arg0: i32, %arg1: memref<1x8x256xf32, #tpu.memory_space<vmem>>, %arg2: memref<24x8xf32, #tpu.memory_space<vmem>>, %arg3: memref<32x1xf32, #tpu.memory_space<vmem>>, %arg4: memref<8x8xf32, #tpu.memory_space<vmem>>, %arg5: memref<8x16xf32, #tpu.memory_space<vmem>>, %arg6: memref<8x8xf32, #tpu.memory_space<vmem>>, %arg7: memref<1x8x256xf32, #tpu.memory_space<vmem>>) attributes {dimension_semantics = [#tpu.dimension_semantics<parallel>], iteration_bounds = array<i64: 2>, scalar_prefetch = 0 : i64, scratch_operands = 0 : i64, tpu.core_type = #tpu.core_type<tc>, window_params = [{transform_indices = @transform_0, window_bounds = array<i64: 1, 8, 256>}, {pipeline_mode = #tpu.pipeline_mode<synchronous>, transform_indices = @transform_1, window_bounds = array<i64: 24, 8>}, {pipeline_mode = #tpu.pipeline_mode<synchronous>, transform_indices = @transform_2, window_bounds = array<i64: 32, 1>}, {pipeline_mode = #tpu.pipeline_mode<synchronous>, transform_indices = @transform_3, window_bounds = array<i64: 8, 8>}, {pipeline_mode = #tpu.pipeline_mode<synchronous>, transform_indices = @transform_4, window_bounds = array<i64: 8, 16>}, {pipeline_mode = #tpu.pipeline_mode<synchronous>, transform_indices = @transform_5, window_bounds = array<i64: 8, 8>}, {transform_indices = @transform_6, window_bounds = array<i64: 1, 8, 256>}]} {
    %c0 = arith.constant 0 : index
    %c0_0 = arith.constant 0 : index
    %0 = vector.load %arg2[%c0, %c0_0] : memref<24x8xf32, #tpu.memory_space<vmem>>, vector<24x8xf32>
    %c0_1 = arith.constant 0 : index
    %c0_2 = arith.constant 0 : index
    %1 = vector.load %arg3[%c0_1, %c0_2] : memref<32x1xf32, #tpu.memory_space<vmem>>, vector<32x1xf32>
    %2 = vector.extract_strided_slice %1 {offsets = [0, 0], sizes = [24, 1], strides = [1, 1]} : vector<32x1xf32> to vector<24x1xf32>
    %3 = vector.extract_strided_slice %1 {offsets = [24, 0], sizes = [8, 1], strides = [1, 1]} : vector<32x1xf32> to vector<8x1xf32>
    %c0_3 = arith.constant 0 : index
    %c0_4 = arith.constant 0 : index
    %4 = vector.load %arg4[%c0_3, %c0_4] : memref<8x8xf32, #tpu.memory_space<vmem>>, vector<8x8xf32>
    %c0_5 = arith.constant 0 : index
    %c0_6 = arith.constant 0 : index
    %5 = vector.load %arg5[%c0_5, %c0_6] : memref<8x16xf32, #tpu.memory_space<vmem>>, vector<8x16xf32>
    %c0_7 = arith.constant 0 : index
    %c0_8 = arith.constant 0 : index
    %6 = vector.load %arg6[%c0_7, %c0_8] : memref<8x8xf32, #tpu.memory_space<vmem>>, vector<8x8xf32>
    %c0_9 = arith.constant 0 : index
    %c0_10 = arith.constant 0 : index
    %c0_11 = arith.constant 0 : index
    %7 = vector.load %arg1[%c0_9, %c0_10, %c0_11] : memref<1x8x256xf32, #tpu.memory_space<vmem>>, vector<1x8x256xf32>
    %8 = vector.shape_cast %7 : vector<1x8x256xf32> to vector<8x256xf32>
    %cst = arith.constant dense<0.000000e+00> : vector<24x256xf32>
    %9 = tpu.matmul %0, %8, %cst {dimension_numbers = #tpu.dot_dimension_numbers<[1], [0], [0], [1], [0, 0, 1, 1], [], []>} : vector<24x8xf32>, vector<8x256xf32>, vector<24x256xf32> -> vector<24x256xf32>
    %10 = vector.broadcast %2 : vector<24x1xf32> to vector<24x256xf32>
    %11 = arith.addf %9, %10 : vector<24x256xf32>
    %12 = vector.extract_strided_slice %11 {offsets = [0, 0], sizes = [8, 256], strides = [1, 1]} : vector<24x256xf32> to vector<8x256xf32>
    %13 = vector.extract_strided_slice %11 {offsets = [8, 0], sizes = [16, 256], strides = [1, 1]} : vector<24x256xf32> to vector<16x256xf32>
    "tpu.trace_start"() <{level = 10 : i32, message = "mh,nh->mn"}> : () -> ()
    %cst_12 = arith.constant dense<0.000000e+00> : vector<16x8xf32>
    %14 = tpu.matmul %13, %12, %cst_12 {dimension_numbers = #tpu.dot_dimension_numbers<[1], [1], [0], [0], [0, 0, 1, 0], [], []>} : vector<16x256xf32>, vector<8x256xf32>, vector<16x8xf32> -> vector<16x8xf32>
    "tpu.trace_stop"() : () -> ()
    %cst_13 = arith.constant dense<0.000000e+00> : vector<16x8xf32>
    %15 = tpu.matmul %14, %4, %cst_13 {dimension_numbers = #tpu.dot_dimension_numbers<[1], [0], [0], [1], [0, 0, 1, 1], [], []>} : vector<16x8xf32>, vector<8x8xf32>, vector<16x8xf32> -> vector<16x8xf32>
    %cst_14 = arith.constant dense<0.000000e+00> : vector<8x8xf32>
    %16 = tpu.matmul %5, %15, %cst_14 {dimension_numbers = #tpu.dot_dimension_numbers<[1], [0], [0], [1], [0, 0, 1, 1], [], []>} : vector<8x16xf32>, vector<16x8xf32>, vector<8x8xf32> -> vector<8x8xf32>
    %17 = arith.addf %16, %6 : vector<8x8xf32>
    %cst_15 = arith.constant dense<0.000000e+00> : vector<8x256xf32>
    %18 = tpu.matmul %17, %12, %cst_15 {dimension_numbers = #tpu.dot_dimension_numbers<[1], [0], [0], [1], [0, 0, 1, 1], [], []>} : vector<8x8xf32>, vector<8x256xf32>, vector<8x256xf32> -> vector<8x256xf32>
    %19 = vector.broadcast %3 : vector<8x1xf32> to vector<8x256xf32>
    %20 = arith.addf %18, %19 : vector<8x256xf32>
    %c0_16 = arith.constant 0 : index
    %c0_17 = arith.constant 0 : index
    %c0_18 = arith.constant 0 : index
    %21 = vector.load %arg7[%c0_16, %c0_17, %c0_18] : memref<1x8x256xf32, #tpu.memory_space<vmem>>, vector<1x8x256xf32>
    %22 = vector.shape_cast %21 : vector<1x8x256xf32> to vector<8x256xf32>
    %23 = vector.shape_cast %20 : vector<8x256xf32> to vector<1x8x256xf32>
    tpu.vector_store %arg7[%c0_16, %c0_17, %c0_18], %23 {strides = array<i32>} : memref<1x8x256xf32, #tpu.memory_space<vmem>>, vector<1x8x256xf32>,
    return
  }
  func.func @transform_0(%arg0: i32) -> (i32, i32, i32) {
    %c0_i32 = arith.constant 0 : i32
    %c0_i32_0 = arith.constant 0 : i32
    %c0_i32_1 = arith.constant 0 : i32
    return %arg0, %c0_i32, %c0_i32_0 : i32, i32, i32
  }
  func.func @transform_1(%arg0: i32) -> (i32, i32) {
    %c0_i32 = arith.constant 0 : i32
    %c0_i32_0 = arith.constant 0 : i32
    %c0_i32_1 = arith.constant 0 : i32
    return %c0_i32, %c0_i32_0 : i32, i32
  }
  func.func @transform_2(%arg0: i32) -> (i32, i32) {
    %c0_i32 = arith.constant 0 : i32
    %c0_i32_0 = arith.constant 0 : i32
    %c0_i32_1 = arith.constant 0 : i32
    return %c0_i32, %c0_i32_0 : i32, i32
  }
  func.func @transform_3(%arg0: i32) -> (i32, i32) {
    %c0_i32 = arith.constant 0 : i32
    %c0_i32_0 = arith.constant 0 : i32
    %c0_i32_1 = arith.constant 0 : i32
    return %c0_i32, %c0_i32_0 : i32, i32
  }
  func.func @transform_4(%arg0: i32) -> (i32, i32) {
    %c0_i32 = arith.constant 0 : i32
    %c0_i32_0 = arith.constant 0 : i32
    %c0_i32_1 = arith.constant 0 : i32
    return %c0_i32, %c0_i32_0 : i32, i32
  }
  func.func @transform_5(%arg0: i32) -> (i32, i32) {
    %c0_i32 = arith.constant 0 : i32
    %c0_i32_0 = arith.constant 0 : i32
    %c0_i32_1 = arith.constant 0 : i32
    return %c0_i32, %c0_i32_0 : i32, i32
  }
  func.func @transform_6(%arg0: i32) -> (i32, i32, i32) {
    %c0_i32 = arith.constant 0 : i32
    %c0_i32_0 = arith.constant 0 : i32
    %c0_i32_1 = arith.constant 0 : i32
    return %arg0, %c0_i32, %c0_i32_0 : i32, i32, i32
  }
}

</mosaic_0001>

<llo_original>
// kernel: tpu_custom_call.1
$region0: #{tpu_custom_call.1}
  #allocation0 [shape = 'u32[]', space=smem, size = 0x4, offset = 0x4, fixed_abs, tag = 'smem constant byte address 0x4 - core index']
  #allocation1 [shape = 'u32[144,128]{1,0:T(1,128)}', space=vmem, size = 0x12000, scoped, tag = 'internal scratch']
  %s0 = inlined_call_operand.vmem [shape: f32[2,8,256], index: 0, kind: input, shape index: {}]
  %s1 = inlined_call_operand.vmem [shape: f32[24,8], index: 1, kind: input, shape index: {}]
  %s2 = inlined_call_operand.vmem [shape: f32[32,1], index: 2, kind: input, shape index: {}]
  %s3 = inlined_call_operand.vmem [shape: f32[8,8], index: 3, kind: input, shape index: {}]
  %s4 = inlined_call_operand.vmem [shape: f32[8,16], index: 4, kind: input, shape index: {}]
  %s5 = inlined_call_operand.vmem [shape: f32[8,8], index: 5, kind: input, shape index: {}]
  %s6 = inlined_call_operand.hbm [shape: f32[2,8,256], index: 6, kind: output, shape index: {}]
  %s7 = sld [smem:[#allocation0]]
  $region57: #{tpu_custom_call.1} parent=0
    _
  %s9 = ssub.s32 1, %s7
  %s10 = scalar_select 0, %s9, %s7
  $region1: #{tpu_custom_call.1} parent=0
    #allocation2 [shape = 'u8[16384]{0}', space=vmem, size = 0x4000, scoped, tag = 'output window, operand 0']
    #allocation3 [shape = 's32[2]{0}', space=sflag, size = 0x8, scoped, tag = 'scoped memory for tpu_custom_call.1']
    %11 = vsyncpa [#allocation3], 0
    %s12 = scalar_lea.sflag [#allocation3], 1
    %13 = vsyncpa %s12, 0
    loop: start=0, step=1, limit=4
    $region2: #{tpu_custom_call.1} parent=1 // loop_pre_header
      _
    $region3: #{tpu_custom_call.1} parent=1 // loop_header
      %s15 = sphi 0, %s19
      %p16 = scmp.ge.s32.totalorder %s15, 4
      %s25 = sphi 0, %s27
      %s28 = sphi 0, %s25
      %s29 = sphi 0, %s28
      %s45 = sphi 0, %s29
      %s49 = sphi 0, %s49
      %s51 = sphi 0, %s49
      %s52 = sphi 0, %s51
      %s66 = sphi 0, %s52
      %s70 = sphi 0, %s70
      %s72 = sphi 0, %s70
      %s73 = sphi 0, %s72
      %s87 = sphi 0, %s73
      %s91 = sphi 0, %s91
      %s93 = sphi 0, %s91
      %s94 = sphi 0, %s93
      %s108 = sphi 0, %s94
      %s112 = sphi 0, %s112
      %s114 = sphi 0, %s112
      %s115 = sphi 0, %s114
      %s129 = sphi 0, %s115
      %s133 = sphi 0, %s133
      %s135 = sphi 0, %s133
      %s136 = sphi 0, %s135
      %s150 = sphi 0, %s136
      %s156 = sphi 0, %s158
      %s159 = sphi 0, %s156
      %s160 = sphi 0, %s159
      %s176 = sphi 0, %s160
    $region4: #{tpu_custom_call.1} parent=1 // loop_header_branch
      %18 = sbr.rel (%p16) target = $region8
    $region5: #{tpu_custom_call.1} parent=1 // loop_body
      %s20 = ssub.s32 %s15, 1
      %s21 = ssub.s32 %s15, 2
      %s22 = sadd.s32 %s15, 1
      %s23 = ssub.s32 %s15, %s22
      %p24 = scmp.eq.s32.totalorder %s23, 0
      %s26 = sadd.s32 %s25, 1
      %s27 = scalar_select %p24, %s25, %s26
      %p30 = pneg %p24
      %p31 = scmp.eq.s32.totalorder %s15, 1
      %p32 = por %p30, %p31
      %p33 = scmp.ne.s32.totalorder %s25, %s28
      %p34 = scmp.eq.s32.totalorder %s15, 0
      %p35 = por %p33, %p34
      %p36 = scmp.ne.s32.totalorder %s25, %s28
      %p37 = scmp.eq.s32.totalorder %s20, 1
      %p38 = por %p36, %p37
      %p39 = scmp.ne.s32.totalorder %s28, %s29
      %p40 = scmp.eq.s32.totalorder %s20, 0
      %p41 = por %p39, %p40
      %p42 = scmp.ne.s32.totalorder %s28, %s29
      %p43 = scmp.eq.s32.totalorder %s21, 1
      %p44 = por %p42, %p43
      %p46 = scmp.ne.s32.totalorder %s29, %s45
      %p47 = scmp.eq.s32.totalorder %s21, 0
      %p48 = por %p46, %p47
      %s50 = sadd.s32 %s49, 1
      %p53 = scmp.eq.s32.totalorder %s15, 1
      %p54 = scmp.ne.s32.totalorder %s49, %s51
      %p55 = scmp.eq.s32.totalorder %s15, 0
      %p56 = por %p54, %p55
      %p57 = scmp.ne.s32.totalorder %s49, %s51
      %p58 = scmp.eq.s32.totalorder %s20, 1
      %p59 = por %p57, %p58
      %p60 = scmp.ne.s32.totalorder %s51, %s52
      %p61 = scmp.eq.s32.totalorder %s20, 0
      %p62 = por %p60, %p61
      %p63 = scmp.ne.s32.totalorder %s51, %s52
      %p64 = scmp.eq.s32.totalorder %s21, 1
      %p65 = por %p63, %p64
      %p67 = scmp.ne.s32.totalorder %s52, %s66
      %p68 = scmp.eq.s32.totalorder %s21, 0
      %p69 = por %p67, %p68
      %s71 = sadd.s32 %s70, 1
      %p74 = scmp.eq.s32.totalorder %s15, 1
      %p75 = scmp.ne.s32.totalorder %s70, %s72
      %p76 = scmp.eq.s32.totalorder %s15, 0
      %p77 = por %p75, %p76
      %p78 = scmp.ne.s32.totalorder %s70, %s72
      %p79 = scmp.eq.s32.totalorder %s20, 1
      %p80 = por %p78, %p79
      %p81 = scmp.ne.s32.totalorder %s72, %s73
      %p82 = scmp.eq.s32.totalorder %s20, 0
      %p83 = por %p81, %p82
      %p84 = scmp.ne.s32.totalorder %s72, %s73
      %p85 = scmp.eq.s32.totalorder %s21, 1
      %p86 = por %p84, %p85
      %p88 = scmp.ne.s32.totalorder %s73, %s87
      %p89 = scmp.eq.s32.totalorder %s21, 0
      %p90 = por %p88, %p89
      %s92 = sadd.s32 %s91, 1
      %p95 = scmp.eq.s32.totalorder %s15, 1
      %p96 = scmp.ne.s32.totalorder %s91, %s93
      %p97 = scmp.eq.s32.totalorder %s15, 0
      %p98 = por %p96, %p97
      %p99 = scmp.ne.s32.totalorder %s91, %s93
      %p100 = scmp.eq.s32.totalorder %s20, 1
      %p101 = por %p99, %p100
      %p102 = scmp.ne.s32.totalorder %s93, %s94
      %p103 = scmp.eq.s32.totalorder %s20, 0
      %p104 = por %p102, %p103
      %p105 = scmp.ne.s32.totalorder %s93, %s94
      %p106 = scmp.eq.s32.totalorder %s21, 1
      %p107 = por %p105, %p106
      %p109 = scmp.ne.s32.totalorder %s94, %s108
      %p110 = scmp.eq.s32.totalorder %s21, 0
      %p111 = por %p109, %p110
      %s113 = sadd.s32 %s112, 1
      %p116 = scmp.eq.s32.totalorder %s15, 1
      %p117 = scmp.ne.s32.totalorder %s112, %s114
      %p118 = scmp.eq.s32.totalorder %s15, 0
      %p119 = por %p117, %p118
      %p120 = scmp.ne.s32.totalorder %s112, %s114
      %p121 = scmp.eq.s32.totalorder %s20, 1
      %p122 = por %p120, %p121
      %p123 = scmp.ne.s32.totalorder %s114, %s115
      %p124 = scmp.eq.s32.totalorder %s20, 0
      %p125 = por %p123, %p124
      %p126 = scmp.ne.s32.totalorder %s114, %s115
      %p127 = scmp.eq.s32.totalorder %s21, 1
      %p128 = por %p126, %p127
      %p130 = scmp.ne.s32.totalorder %s115, %s129
      %p131 = scmp.eq.s32.totalorder %s21, 0
      %p132 = por %p130, %p131
      %s134 = sadd.s32 %s133, 1
      %p137 = scmp.eq.s32.totalorder %s15, 1
      %p138 = scmp.ne.s32.totalorder %s133, %s135
      %p139 = scmp.eq.s32.totalorder %s15, 0
      %p140 = por %p138, %p139
      %p141 = scmp.ne.s32.totalorder %s133, %s135
      %p142 = scmp.eq.s32.totalorder %s20, 1
      %p143 = por %p141, %p142
      %p144 = scmp.ne.s32.totalorder %s135, %s136
      %p145 = scmp.eq.s32.totalorder %s20, 0
      %p146 = por %p144, %p145
      %p147 = scmp.ne.s32.totalorder %s135, %s136
      %p148 = scmp.eq.s32.totalorder %s21, 1
      %p149 = por %p147, %p148
      %p151 = scmp.ne.s32.totalorder %s136, %s150
      %p152 = scmp.eq.s32.totalorder %s21, 0
      %p153 = por %p151, %p152
      %s154 = ssub.s32 %s15, %s22
      %p155 = scmp.eq.s32.totalorder %s154, 0
      %s157 = sadd.s32 %s156, 1
      %s158 = scalar_select %p155, %s156, %s157
      %p161 = pneg %p155
      %p162 = scmp.eq.s32.totalorder %s15, 1
      %p163 = por %p161, %p162
      %p164 = scmp.ne.s32.totalorder %s156, %s159
      %p165 = scmp.eq.s32.totalorder %s15, 0
      %p166 = por %p164, %p165
      %p167 = scmp.ne.s32.totalorder %s156, %s159
      %p168 = scmp.eq.s32.totalorder %s20, 1
      %p169 = por %p167, %p168
      %p170 = scmp.ne.s32.totalorder %s159, %s160
      %p171 = scmp.eq.s32.totalorder %s20, 0
      %p172 = por %p170, %p171
      %p173 = scmp.ne.s32.totalorder %s159, %s160
      %p174 = scmp.eq.s32.totalorder %s21, 1
      %p175 = por %p173, %p174
      %p177 = scmp.ne.s32.totalorder %s160, %s176
      %p178 = scmp.eq.s32.totalorder %s21, 0
      %p179 = por %p177, %p178
      %p180 = scmp.le.s32.totalorder 1, %s15
      %p181 = scmp.lt.s32.totalorder %s15, 3
      %p182 = pnand %p180, %p181
      %p183 = pneg %p182
      // Predicated region
      $region9: #{tpu_custom_call.1} parent=5 // pred_check
        _
      $region10: #{tpu_custom_call.1} parent=5 // pred_check_branch
        %185 = sbr.rel (%p182) target = $region12
      $region11: #{tpu_custom_call.1} parent=5 // pred_region
        %s186 = ssub.s32 %s15, 1
        // Predicated region
        $region13: #{tpu_custom_call.1} parent=11 // pred_check
          %p187 = pneg %p62
        $region14: #{tpu_custom_call.1} parent=11 // pred_check_branch
          %189 = sbr.rel (%p187) target = $region16
        $region15: #{tpu_custom_call.1} parent=11 // pred_region
          _
        $region16: #{tpu_custom_call.1} parent=11 // pred_fallthru
          _
        // Predicated region
        $region17: #{tpu_custom_call.1} parent=11 // pred_check
          %p190 = pneg %p83
        $region18: #{tpu_custom_call.1} parent=11 // pred_check_branch
          %192 = sbr.rel (%p190) target = $region20
        $region19: #{tpu_custom_call.1} parent=11 // pred_region
          _
        $region20: #{tpu_custom_call.1} parent=11 // pred_fallthru
          _
        // Predicated region
        $region21: #{tpu_custom_call.1} parent=11 // pred_check
          %p193 = pneg %p104
        $region22: #{tpu_custom_call.1} parent=11 // pred_check_branch
          %195 = sbr.rel (%p193) target = $region24
        $region23: #{tpu_custom_call.1} parent=11 // pred_region
          _
        $region24: #{tpu_custom_call.1} parent=11 // pred_fallthru
          _
        // Predicated region
        $region25: #{tpu_custom_call.1} parent=11 // pred_check
          %p196 = pneg %p125
        $region26: #{tpu_custom_call.1} parent=11 // pred_check_branch
          %198 = sbr.rel (%p196) target = $region28
        $region27: #{tpu_custom_call.1} parent=11 // pred_region
          _
        $region28: #{tpu_custom_call.1} parent=11 // pred_fallthru
          _
        // Predicated region
        $region29: #{tpu_custom_call.1} parent=11 // pred_check
          %p199 = pneg %p146
        $region30: #{tpu_custom_call.1} parent=11 // pred_check_branch
          %201 = sbr.rel (%p199) target = $region32
        $region31: #{tpu_custom_call.1} parent=11 // pred_region
          _
        $region32: #{tpu_custom_call.1} parent=11 // pred_fallthru
          _
      $region12: #{tpu_custom_call.1} parent=5 // pred_fallthru
        _
      %p202 = scmp.lt.s32.totalorder %s15, 2
      // Predicated region
      $region33: #{tpu_custom_call.1} parent=5 // pred_check
        %p203 = pneg %p202
      $region34: #{tpu_custom_call.1} parent=5 // pred_check_branch
        %205 = sbr.rel (%p203) target = $region36
      $region35: #{tpu_custom_call.1} parent=5 // pred_region
        // Predicated region
        $region37: #{tpu_custom_call.1} parent=35 // pred_check
          %p206 = pneg %p35
        $region38: #{tpu_custom_call.1} parent=35 // pred_check_branch
          %208 = sbr.rel (%p206) target = $region40
        $region39: #{tpu_custom_call.1} parent=35 // pred_region
          %p209 = scmp.lt.s32.totalorder %s15, 1
          %s210 = scalar_select %p209, %s15, 1
          %s211 = smul.addr %s210, 2
          %s212 = smul.addr %s211, 8
          %s213 = scalar_lea.vmem %s0, %s212
        $region40: #{tpu_custom_call.1} parent=35 // pred_fallthru
          _
      $region36: #{tpu_custom_call.1} parent=5 // pred_fallthru
        _
      %p214 = scmp.le.s32.totalorder 1, %s15
      %p215 = scmp.lt.s32.totalorder %s15, 3
      %p216 = pnand %p214, %p215
      %p217 = pneg %p216
      // Predicated region
      $region41: #{tpu_custom_call.1} parent=5 // pred_check
        _
      $region42: #{tpu_custom_call.1} parent=5 // pred_check_branch
        %219 = sbr.rel (%p216) target = $region44
      $region43: #{tpu_custom_call.1} parent=5 // pred_region
        %s220 = ssub.s32 %s15, 1
        %p221 = scmp.lt.s32.totalorder %s20, 1
        %s222 = scalar_select %p221, %s20, 1
        %s223 = smul.addr %s222, 2
        %s224 = smul.addr %s223, 8
        %s225 = scalar_lea.vmem %s0, %s224
        %p226 = pneg %p41
        %p227 = pneg %p38
        %p228 = pneg %p62
        %p229 = pneg %p59
        %p230 = pneg %p83
        %p231 = pneg %p80
        %p232 = pneg %p104
        %p233 = pneg %p101
        %p234 = pneg %p125
        %p235 = pneg %p122
        %p236 = pneg %p146
        %p237 = pneg %p143
        %p238 = pneg %p172
        %p239 = pneg %p169
        %s240 = sand.u32 %s159, 1
        %s241 = scalar_lea.sflag [#allocation3], %s240
        %s242 = sand.u32 %s159, 1
        %s243 = smul.addr %s242, 16
        %s244 = scalar_lea.vmem [#allocation2], %s243
        %p245 = scmp.lt.s32.totalorder %s20, 1
        %s246 = scalar_select %p245, %s20, 1
        %s247 = smul.addr %s246, 2
        %s248 = smul.addr %s247, 8
        %s249 = scalar_lea.vmem %s0, %s248
        %v250 = vld [vmem:[%s1] sm:$0xff]
        %v251 = vld [vmem:[%s1 + $0x8] sm:$0xff]
        %v252 = vld [vmem:[%s1 + $0x10] sm:$0xff]
        %v253 = vld [vmem:[%s2] sm:$0xff]
        %v254 = vld [vmem:[%s2 + $0x8] sm:$0xff]
        %v255 = vld [vmem:[%s2 + $0x10] sm:$0xff]
        %v256 = vld [vmem:[%s2 + $0x18] sm:$0xff]
        %v257 = vld [vmem:[%s3] sm:$0xff]
        %v258 = vld [vmem:[%s4] sm:$0xff]
        %v259 = vld [vmem:[%s5] sm:$0xff]
        %v260 = vld [vmem:[%s249] sm:$0xff]
        %v261 = vld [vmem:[%s249 + $0x8] sm:$0xff]
        %263 = vset.pattern.permute.xlu0 0
        %264 = vperm.xlu0 %263, %v253
        %v265 = vpop.permute.xlu0 %264
        %268 = vset.pattern.permute.xlu0 0
        %269 = vperm.xlu0 %268, %v254
        %v270 = vpop.permute.xlu0 %269
        %273 = vset.pattern.permute.xlu0 0
        %274 = vperm.xlu0 %273, %v255
        %v275 = vpop.permute.xlu0 %274
        %vm277 = vcmask 64512
        %v279 = vsel %vm277, %v250, 0
        %v282 = vsel %vm277, %v251, 0
        %v285 = vsel %vm277, %v252, 0
        %287 = vmatprep.subr.mxu0 %v261
        %288 = vmatpush1.msra.mxu0 %v260
        %289 = vmatprep.subr.mxu0 0.0
        %290 = vmatpush1.msra.mxu0 0.0
        %291 = vmatprep.subr.mxu0 0.0
        %292 = vmatpush1.msra.mxu0 0.0
        %293 = vmatprep.subr.mxu0 0.0
        %294 = vmatpush1.msra.mxu0 0.0
        %295 = vmatprep.subr.mxu0 0.0
        %296 = vmatpush1.msra.mxu0 0.0
        %297 = vmatprep.subr.mxu0 0.0
        %298 = vmatpush1.msra.mxu0 0.0
        %299 = vmatprep.subr.mxu0 0.0
        %300 = vmatpush1.msra.mxu0 0.0
        %301 = vmatprep.subr.mxu0 0.0
        %302 = vmatpush1.msra.mxu0 0.0
        %303 = vmatprep.subr.mxu0 0.0
        %304 = vmatpush1.msra.mxu0 0.0
        %305 = vmatprep.subr.mxu0 0.0
        %306 = vmatpush1.msra.mxu0 0.0
        %307 = vmatprep.subr.mxu0 0.0
        %308 = vmatpush1.msra.mxu0 0.0
        %309 = vmatprep.subr.mxu0 0.0
        %310 = vmatpush1.msra.mxu0 0.0
        %311 = vmatprep.subr.mxu0 0.0
        %312 = vmatpush1.msra.mxu0 0.0
        %313 = vmatprep.subr.mxu0 0.0
        %314 = vmatpush1.msra.mxu0 0.0
        %315 = vmatprep.subr.mxu0 0.0
        %316 = vmatpush1.msra.mxu0 0.0
        %317 = vmatprep.subr.mxu0 0.0
        %318 = vmatpush1.msra.mxu0 0.0
        %319 = vmatprep.subr.mxu0 0.0
        %320 = vmatpush1.msra.mxu0 0.0
        %321 = vmatprep.subr.mxu0 0.0
        %322 = vmatpush1.msra.mxu0 0.0
        %323 = vmatprep.subr.mxu0 0.0
        %324 = vmatpush1.msra.mxu0 0.0
        %325 = vmatprep.subr.mxu0 0.0
        %326 = vmatpush1.msra.mxu0 0.0
        %327 = vmatprep.subr.mxu0 0.0
        %328 = vmatpush1.msra.mxu0 0.0
        %329 = vmatprep.subr.mxu0 0.0
        %330 = vmatpush1.msra.mxu0 0.0
        %331 = vmatprep.subr.mxu0 0.0
        %332 = vmatpush1.msra.mxu0 0.0
        %333 = vmatprep.subr.mxu0 0.0
        %334 = vmatpush1.msra.mxu0 0.0
        %335 = vmatprep.subr.mxu0 0.0
        %336 = vmatpush1.msra.mxu0 0.0
        %337 = vmatprep.subr.mxu0 0.0
        %338 = vmatpush1.msra.mxu0 0.0
        %339 = vmatprep.subr.mxu0 0.0
        %340 = vmatpush1.msra.mxu0 0.0
        %341 = vmatprep.subr.mxu0 0.0
        %342 = vmatpush1.msra.mxu0 0.0
        %343 = vmatprep.subr.mxu0 0.0
        %344 = vmatpush1.msra.mxu0 0.0
        %345 = vmatprep.subr.mxu0 0.0
        %346 = vmatpush1.msra.mxu0 0.0
        %347 = vmatprep.subr.mxu0 0.0
        %348 = vmatpush1.msra.mxu0 0.0
        %349 = vmatprep.subr.mxu0 0.0
        %350 = vmatpush1.msra.mxu0 0.0
        %351 = vmatprep.mubr.f32.mxu0 0.0
        %352 = vmatmul.mubr.f32.gmra.mrb[0].mxu0 %v279
        %v353 = vpop.f32.mrb[0].mxu0
        %v354 = vadd.f32 %v265, %v353
        %v355 = vpop.f32.mrb[0].mxu0
        %v356 = vadd.f32 %v265, %v355
        %357 = vmatprep.mubr.f32.mxu0 0.0
        %358 = vmatmul.mubr.f32.gmra.mrb[0].mxu0 %v282
        %v359 = vpop.f32.mrb[0].mxu0
        %v360 = vadd.f32 %v270, %v359
        %v361 = vpop.f32.mrb[0].mxu0
        %v362 = vadd.f32 %v270, %v361
        %363 = vmatprep.mubr.f32.mxu0 0.0
        %364 = vmatmul.mubr.f32.gmra.mrb[0].mxu0 %v285
        %v365 = vpop.f32.mrb[0].mxu0
        %v366 = vadd.f32 %v275, %v365
        %v367 = vpop.f32.mrb[0].mxu0
        %v368 = vadd.f32 %v275, %v367
        %369 = vdwg.mxu0
        %370 = vmatprep.subr.mxu0 %v356
        %371 = vmatpush1.xpose.msra.mxu0 %v354
        %372 = vmatprep.subr.mxu0 0.0
        %373 = vmatpush1.xpose.msra.mxu0 0.0
        %374 = vmatprep.subr.mxu0 0.0
        %375 = vmatpush1.xpose.msra.mxu0 0.0
        %376 = vmatprep.subr.mxu0 0.0
        %377 = vmatpush1.xpose.msra.mxu0 0.0
        %378 = vmatprep.subr.mxu0 0.0
        %379 = vmatpush1.xpose.msra.mxu0 0.0
        %380 = vmatprep.subr.mxu0 0.0
        %381 = vmatpush1.xpose.msra.mxu0 0.0
        %382 = vmatprep.subr.mxu0 0.0
        %383 = vmatpush1.xpose.msra.mxu0 0.0
        %384 = vmatprep.subr.mxu0 0.0
        %385 = vmatpush1.xpose.msra.mxu0 0.0
        %386 = vmatprep.subr.mxu0 0.0
        %387 = vmatpush1.xpose.msra.mxu0 0.0
        %388 = vmatprep.subr.mxu0 0.0
        %389 = vmatpush1.xpose.msra.mxu0 0.0
        %390 = vmatprep.subr.mxu0 0.0
        %391 = vmatpush1.xpose.msra.mxu0 0.0
        %392 = vmatprep.subr.mxu0 0.0
        %393 = vmatpush1.xpose.msra.mxu0 0.0
        %394 = vmatprep.subr.mxu0 0.0
        %395 = vmatpush1.xpose.msra.mxu0 0.0
        %396 = vmatprep.subr.mxu0 0.0
        %397 = vmatpush1.xpose.msra.mxu0 0.0
        %398 = vmatprep.subr.mxu0 0.0
        %399 = vmatpush1.xpose.msra.mxu0 0.0
        %400 = vmatprep.subr.mxu0 0.0
        %401 = vmatpush1.xpose.msra.mxu0 0.0
        %402 = vmatprep.subr.mxu0 0.0
        %403 = vmatpush1.xpose.msra.mxu0 0.0
        %404 = vmatprep.subr.mxu0 0.0
        %405 = vmatpush1.xpose.msra.mxu0 0.0
        %406 = vmatprep.subr.mxu0 0.0
        %407 = vmatpush1.xpose.msra.mxu0 0.0
        %408 = vmatprep.subr.mxu0 0.0
        %409 = vmatpush1.xpose.msra.mxu0 0.0
        %410 = vmatprep.subr.mxu0 0.0
        %411 = vmatpush1.xpose.msra.mxu0 0.0
        %412 = vmatprep.subr.mxu0 0.0
        %413 = vmatpush1.xpose.msra.mxu0 0.0
        %414 = vmatprep.subr.mxu0 0.0
        %415 = vmatpush1.xpose.msra.mxu0 0.0
        %416 = vmatprep.subr.mxu0 0.0
        %417 = vmatpush1.xpose.msra.mxu0 0.0
        %418 = vmatprep.subr.mxu0 0.0
        %419 = vmatpush1.xpose.msra.mxu0 0.0
        %420 = vmatprep.subr.mxu0 0.0
        %421 = vmatpush1.xpose.msra.mxu0 0.0
        %422 = vmatprep.subr.mxu0 0.0
        %423 = vmatpush1.xpose.msra.mxu0 0.0
        %424 = vmatprep.subr.mxu0 0.0
        %425 = vmatpush1.xpose.msra.mxu0 0.0
        %426 = vmatprep.subr.mxu0 0.0
        %427 = vmatpush1.xpose.msra.mxu0 0.0
        %428 = vmatprep.subr.mxu0 0.0
        %429 = vmatpush1.xpose.msra.mxu0 0.0
        %430 = vmatprep.subr.mxu0 0.0
        %431 = vmatpush1.xpose.msra.mxu0 0.0
        %432 = vmatprep.subr.mxu0 0.0
        %433 = vmatpush1.xpose.msra.mxu0 0.0
        %434 = vmatprep.mubr.f32.mxu0 %v362
        %435 = vmatmul.mubr.f32.gmra.mrb[0].mxu0 %v360
        %v436 = vpop.f32.mrb[0].mxu0
        %v437 = vadd.f32 0.0, %v436
        %v438 = vpop.f32.mrb[0].mxu0
        %439 = vmatprep.mubr.f32.mxu0 %v368
        %440 = vmatmul.mubr.f32.gmra.mrb[0].mxu0 %v366
        %v441 = vpop.f32.mrb[0].mxu0
        %v442 = vadd.f32 0.0, %v441
        %v443 = vpop.f32.mrb[0].mxu0
        %444 = vdwg.mxu0
        %v446 = vsel %vm277, %v437, 0
        %v449 = vsel %vm277, %v442, 0
        %451 = vmatprep.subr.mxu0 0.0
        %452 = vmatpush1.msra.mxu0 %v257
        %453 = vmatprep.subr.mxu0 0.0
        %454 = vmatpush1.msra.mxu0 0.0
        %455 = vmatprep.subr.mxu0 0.0
        %456 = vmatpush1.msra.mxu0 0.0
        %457 = vmatprep.subr.mxu0 0.0
        %458 = vmatpush1.msra.mxu0 0.0
        %459 = vmatprep.subr.mxu0 0.0
        %460 = vmatpush1.msra.mxu0 0.0
        %461 = vmatprep.subr.mxu0 0.0
        %462 = vmatpush1.msra.mxu0 0.0
        %463 = vmatprep.subr.mxu0 0.0
        %464 = vmatpush1.msra.mxu0 0.0
        %465 = vmatprep.subr.mxu0 0.0
        %466 = vmatpush1.msra.mxu0 0.0
        %467 = vmatprep.subr.mxu0 0.0
        %468 = vmatpush1.msra.mxu0 0.0
        %469 = vmatprep.subr.mxu0 0.0
        %470 = vmatpush1.msra.mxu0 0.0
        %471 = vmatprep.subr.mxu0 0.0
        %472 = vmatpush1.msra.mxu0 0.0
        %473 = vmatprep.subr.mxu0 0.0
        %474 = vmatpush1.msra.mxu0 0.0
        %475 = vmatprep.subr.mxu0 0.0
        %476 = vmatpush1.msra.mxu0 0.0
        %477 = vmatprep.subr.mxu0 0.0
        %478 = vmatpush1.msra.mxu0 0.0
        %479 = vmatprep.subr.mxu0 0.0
        %480 = vmatpush1.msra.mxu0 0.0
        %481 = vmatprep.subr.mxu0 0.0
        %482 = vmatpush1.msra.mxu0 0.0
        %483 = vmatprep.subr.mxu0 0.0
        %484 = vmatpush1.msra.mxu0 0.0
        %485 = vmatprep.subr.mxu0 0.0
        %486 = vmatpush1.msra.mxu0 0.0
        %487 = vmatprep.subr.mxu0 0.0
        %488 = vmatpush1.msra.mxu0 0.0
        %489 = vmatprep.subr.mxu0 0.0
        %490 = vmatpush1.msra.mxu0 0.0
        %491 = vmatprep.subr.mxu0 0.0
        %492 = vmatpush1.msra.mxu0 0.0
        %493 = vmatprep.subr.mxu0 0.0
        %494 = vmatpush1.msra.mxu0 0.0
        %495 = vmatprep.subr.mxu0 0.0
        %496 = vmatpush1.msra.mxu0 0.0
        %497 = vmatprep.subr.mxu0 0.0
        %498 = vmatpush1.msra.mxu0 0.0
        %499 = vmatprep.subr.mxu0 0.0
        %500 = vmatpush1.msra.mxu0 0.0
        %501 = vmatprep.subr.mxu0 0.0
        %502 = vmatpush1.msra.mxu0 0.0
        %503 = vmatprep.subr.mxu0 0.0
        %504 = vmatpush1.msra.mxu0 0.0
        %505 = vmatprep.subr.mxu0 0.0
        %506 = vmatpush1.msra.mxu0 0.0
        %507 = vmatprep.subr.mxu0 0.0
        %508 = vmatpush1.msra.mxu0 0.0
        %509 = vmatprep.subr.mxu0 0.0
        %510 = vmatpush1.msra.mxu0 0.0
        %511 = vmatprep.subr.mxu0 0.0
        %512 = vmatpush1.msra.mxu0 0.0
        %513 = vmatprep.subr.mxu0 0.0
        %514 = vmatpush1.msra.mxu0 0.0
        %515 = vmatprep.mubr.f32.mxu0 0.0
        %516 = vmatmul.mubr.f32.gmra.mrb[0].mxu0 %v446
        %v517 = vpop.f32.mrb[0].mxu0
        %v518 = vadd.f32 0.0, %v517
        %v519 = vpop.f32.mrb[0].mxu0
        %520 = vmatprep.mubr.f32.mxu0 0.0
        %521 = vmatmul.mubr.f32.gmra.mrb[0].mxu0 %v449
        %v522 = vpop.f32.mrb[0].mxu0
        %v523 = vadd.f32 0.0, %v522
        %v524 = vpop.f32.mrb[0].mxu0
        %525 = vdwg.mxu0
        %vm526 = vcmask 130048
        %v528 = vsel %vm526, %v258, 0
        %530 = vmatprep.subr.mxu0 0.0
        %531 = vmatpush1.msra.mxu0 %v518
        %532 = vmatprep.subr.mxu0 0.0
        %533 = vmatpush1.msra.mxu0 %v523
        %534 = vmatprep.subr.mxu0 0.0
        %535 = vmatpush1.msra.mxu0 0.0
        %536 = vmatprep.subr.mxu0 0.0
        %537 = vmatpush1.msra.mxu0 0.0
        %538 = vmatprep.subr.mxu0 0.0
        %539 = vmatpush1.msra.mxu0 0.0
        %540 = vmatprep.subr.mxu0 0.0
        %541 = vmatpush1.msra.mxu0 0.0
        %542 = vmatprep.subr.mxu0 0.0
        %543 = vmatpush1.msra.mxu0 0.0
        %544 = vmatprep.subr.mxu0 0.0
        %545 = vmatpush1.msra.mxu0 0.0
        %546 = vmatprep.subr.mxu0 0.0
        %547 = vmatpush1.msra.mxu0 0.0
        %548 = vmatprep.subr.mxu0 0.0
        %549 = vmatpush1.msra.mxu0 0.0
        %550 = vmatprep.subr.mxu0 0.0
        %551 = vmatpush1.msra.mxu0 0.0
        %552 = vmatprep.subr.mxu0 0.0
        %553 = vmatpush1.msra.mxu0 0.0
        %554 = vmatprep.subr.mxu0 0.0
        %555 = vmatpush1.msra.mxu0 0.0
        %556 = vmatprep.subr.mxu0 0.0
        %557 = vmatpush1.msra.mxu0 0.0
        %558 = vmatprep.subr.mxu0 0.0
        %559 = vmatpush1.msra.mxu0 0.0
        %560 = vmatprep.subr.mxu0 0.0
        %561 = vmatpush1.msra.mxu0 0.0
        %562 = vmatprep.subr.mxu0 0.0
        %563 = vmatpush1.msra.mxu0 0.0
        %564 = vmatprep.subr.mxu0 0.0
        %565 = vmatpush1.msra.mxu0 0.0
        %566 = vmatprep.subr.mxu0 0.0
        %567 = vmatpush1.msra.mxu0 0.0
        %568 = vmatprep.subr.mxu0 0.0
        %569 = vmatpush1.msra.mxu0 0.0
        %570 = vmatprep.subr.mxu0 0.0
        %571 = vmatpush1.msra.mxu0 0.0
        %572 = vmatprep.subr.mxu0 0.0
        %573 = vmatpush1.msra.mxu0 0.0
        %574 = vmatprep.subr.mxu0 0.0
        %575 = vmatpush1.msra.mxu0 0.0
        %576 = vmatprep.subr.mxu0 0.0
        %577 = vmatpush1.msra.mxu0 0.0
        %578 = vmatprep.subr.mxu0 0.0
        %579 = vmatpush1.msra.mxu0 0.0
        %580 = vmatprep.subr.mxu0 0.0
        %581 = vmatpush1.msra.mxu0 0.0
        %582 = vmatprep.subr.mxu0 0.0
        %583 = vmatpush1.msra.mxu0 0.0
        %584 = vmatprep.subr.mxu0 0.0
        %585 = vmatpush1.msra.mxu0 0.0
        %586 = vmatprep.subr.mxu0 0.0
        %587 = vmatpush1.msra.mxu0 0.0
        %588 = vmatprep.subr.mxu0 0.0
        %589 = vmatpush1.msra.mxu0 0.0
        %590 = vmatprep.subr.mxu0 0.0
        %591 = vmatpush1.msra.mxu0 0.0
        %592 = vmatprep.subr.mxu0 0.0
        %593 = vmatpush1.msra.mxu0 0.0
        %594 = vmatprep.mubr.f32.mxu0 0.0
        %595 = vmatmul.mubr.f32.gmra.mrb[0].mxu0 %v528
        %v596 = vpop.f32.mrb[0].mxu0
        %v597 = vadd.f32 %v259, %v596
        %v598 = vpop.f32.mrb[0].mxu0
        %599 = vdwg.mxu0
        %601 = vset.pattern.permute.xlu0 0
        %602 = vperm.xlu0 %601, %v256
        %v603 = vpop.permute.xlu0 %602
        %v606 = vsel %vm277, %v597, 0
        %608 = vmatprep.subr.mxu0 %v356
        %609 = vmatpush1.msra.mxu0 %v354
        %610 = vmatprep.subr.mxu0 0.0
        %611 = vmatpush1.msra.mxu0 0.0
        %612 = vmatprep.subr.mxu0 0.0
        %613 = vmatpush1.msra.mxu0 0.0
        %614 = vmatprep.subr.mxu0 0.0
        %615 = vmatpush1.msra.mxu0 0.0
        %616 = vmatprep.subr.mxu0 0.0
        %617 = vmatpush1.msra.mxu0 0.0
        %618 = vmatprep.subr.mxu0 0.0
        %619 = vmatpush1.msra.mxu0 0.0
        %620 = vmatprep.subr.mxu0 0.0
        %621 = vmatpush1.msra.mxu0 0.0
        %622 = vmatprep.subr.mxu0 0.0
        %623 = vmatpush1.msra.mxu0 0.0
        %624 = vmatprep.subr.mxu0 0.0
        %625 = vmatpush1.msra.mxu0 0.0
        %626 = vmatprep.subr.mxu0 0.0
        %627 = vmatpush1.msra.mxu0 0.0
        %628 = vmatprep.subr.mxu0 0.0
        %629 = vmatpush1.msra.mxu0 0.0
        %630 = vmatprep.subr.mxu0 0.0
        %631 = vmatpush1.msra.mxu0 0.0
        %632 = vmatprep.subr.mxu0 0.0
        %633 = vmatpush1.msra.mxu0 0.0
        %634 = vmatprep.subr.mxu0 0.0
        %635 = vmatpush1.msra.mxu0 0.0
        %636 = vmatprep.subr.mxu0 0.0
        %637 = vmatpush1.msra.mxu0 0.0
        %638 = vmatprep.subr.mxu0 0.0
        %639 = vmatpush1.msra.mxu0 0.0
        %640 = vmatprep.subr.mxu0 0.0
        %641 = vmatpush1.msra.mxu0 0.0
        %642 = vmatprep.subr.mxu0 0.0
        %643 = vmatpush1.msra.mxu0 0.0
        %644 = vmatprep.subr.mxu0 0.0
        %645 = vmatpush1.msra.mxu0 0.0
        %646 = vmatprep.subr.mxu0 0.0
        %647 = vmatpush1.msra.mxu0 0.0
        %648 = vmatprep.subr.mxu0 0.0
        %649 = vmatpush1.msra.mxu0 0.0
        %650 = vmatprep.subr.mxu0 0.0
        %651 = vmatpush1.msra.mxu0 0.0
        %652 = vmatprep.subr.mxu0 0.0
        %653 = vmatpush1.msra.mxu0 0.0
        %654 = vmatprep.subr.mxu0 0.0
        %655 = vmatpush1.msra.mxu0 0.0
        %656 = vmatprep.subr.mxu0 0.0
        %657 = vmatpush1.msra.mxu0 0.0
        %658 = vmatprep.subr.mxu0 0.0
        %659 = vmatpush1.msra.mxu0 0.0
        %660 = vmatprep.subr.mxu0 0.0
        %661 = vmatpush1.msra.mxu0 0.0
        %662 = vmatprep.subr.mxu0 0.0
        %663 = vmatpush1.msra.mxu0 0.0
        %664 = vmatprep.subr.mxu0 0.0
        %665 = vmatpush1.msra.mxu0 0.0
        %666 = vmatprep.subr.mxu0 0.0
        %667 = vmatpush1.msra.mxu0 0.0
        %668 = vmatprep.subr.mxu0 0.0
        %669 = vmatpush1.msra.mxu0 0.0
        %670 = vmatprep.subr.mxu0 0.0
        %671 = vmatpush1.msra.mxu0 0.0
        %672 = vmatprep.mubr.f32.mxu0 0.0
        %673 = vmatmul.mubr.f32.gmra.mrb[0].mxu0 %v606
        %v674 = vpop.f32.mrb[0].mxu0
        %v675 = vadd.f32 %v603, %v674
        %v676 = vpop.f32.mrb[0].mxu0
        %v677 = vadd.f32 %v603, %v676
        %678 = vdwg.mxu0
        %679 = vst [vmem:[%s244] sm:$0xff] %v675
        %680 = vst [vmem:[%s244 + $0x8] sm:$0xff] %v677
        %s681 = sand.u32 %s159, 1
        %s682 = scalar_lea.sflag [#allocation3], %s681
        %s683 = sand.u32 %s159, 1
        %s684 = smul.addr %s683, 16
        %s685 = scalar_lea.vmem [#allocation2], %s684
        // Predicated region
        $region45: #{tpu_custom_call.1} parent=43 // pred_check
          %p686 = pneg %p169
        $region46: #{tpu_custom_call.1} parent=43 // pred_check_branch
          %688 = sbr.rel (%p686) target = $region48
        $region47: #{tpu_custom_call.1} parent=43 // pred_region
          %s690 = ssub.s32 256, 256
          %691 = vsyncadd %s682, %s690
          %s692 = smul.addr %s20, 2
          %s693 = smul.addr %s692, 128
          %s694 = scalar_lea.hbm %s6, %s693
          %s696 = sshll.u32 %s685, 4
          %s697 = int_to_ptr.vmem [resolvable:$true] %s696
          %699 = dma.vmem_to_hbm [thread:$0]  %s697, 256, %s694, %s682
        $region48: #{tpu_custom_call.1} parent=43 // pred_fallthru
          _
      $region44: #{tpu_custom_call.1} parent=5 // pred_fallthru
        _
      %p700 = scmp.le.s32.totalorder 2, %s15
      // Predicated region
      $region49: #{tpu_custom_call.1} parent=5 // pred_check
        %p701 = pneg %p700
      $region50: #{tpu_custom_call.1} parent=5 // pred_check_branch
        %703 = sbr.rel (%p701) target = $region52
      $region51: #{tpu_custom_call.1} parent=5 // pred_region
        %s704 = ssub.s32 %s15, 2
        // Predicated region
        $region53: #{tpu_custom_call.1} parent=51 // pred_check
          %p705 = pneg %p175
        $region54: #{tpu_custom_call.1} parent=51 // pred_check_branch
          %707 = sbr.rel (%p705) target = $region56
        $region55: #{tpu_custom_call.1} parent=51 // pred_region
          %s708 = sand.u32 %s160, 1
          %s709 = scalar_lea.sflag [#allocation3], %s708
          %s710 = sand.u32 %s160, 1
          %s711 = smul.addr %s710, 16
          %s712 = scalar_lea.vmem [#allocation2], %s711
          %713 = dma.done %s709, 256
        $region56: #{tpu_custom_call.1} parent=51 // pred_fallthru
          _
      $region52: #{tpu_custom_call.1} parent=5 // pred_fallthru
        _
    $region6: #{tpu_custom_call.1} parent=1 // loop_footer
      %s19 = sadd.s32 1, %s15
    $region7: #{tpu_custom_call.1} parent=1 // loop_footer_branch
      %14 = sbr.rel target = $region3
    $region8: #{tpu_custom_call.1} parent=1 // loop_exit
      _
    %714 = vsyncpa [#allocation3], 1
    %s715 = scalar_lea.sflag [#allocation3], 1
    %716 = vsyncpa %s715, 1

</llo_original>
